<compile_context>
chip_gen: v7x
topology: tpu7x:2x2x1
jax: 0.10.0
libtpu: 0.0.40
codegen_flags: <defaults>
</compile_context>

<pallas_src>
import functools

import jax
import jax.numpy as jnp
from jax.experimental import pallas as pl
from jax.experimental.pallas import tpu as pltpu

LANE = 128  # width of the packed, lane-dense output slab


def moe_wrapper_kernel(x_ref, wfused_ref, bfused_ref, out_ref, *, n, C):
    B = x_ref.shape[0]
    nc = n * C

    x = x_ref[...]                                              # (B, D)

    # ---- experts + gating in ONE fused MXU matmul ---------------------------
    fused = jnp.dot(x, wfused_ref[...],
                    preferred_element_type=jnp.float32) + bfused_ref[...]  # (B, n*C + n)
    preds = fused[:, :nc]                                       # (B, n*C) expert logits
    logits = fused[:, nc:]                                      # (B, n)   gate logits

    # ---- gating softmax over experts ----------------------------------------
    gm = jnp.max(logits, axis=-1, keepdims=True)
    ge = jnp.exp(logits - gm)
    weights = ge / jnp.sum(ge, axis=-1, keepdims=True)          # (B, n)

    # ---- expert softmax, slab-wide ------------------------------------------
    # One per-row max over all n*C columns is a valid shift for every expert's
    # softmax (constant within each expert's C-block), so a single EUP exp pass
    # covers all experts.
    pmax = jnp.max(preds, axis=-1, keepdims=True)               # (B, 1)
    ex = jnp.exp(preds - pmax)                                  # (B, n*C)

    # Per-expert denominators gathered into one (B, n) array -> single divide.
    sums = jnp.concatenate(
        [jnp.sum(ex[:, e * C:(e + 1) * C], axis=-1, keepdims=True)
         for e in range(n)],
        axis=-1)                                                # (B, n)
    scale = weights / sums                                      # (B, n) exact divide

    # ---- combine: gate-weighted sum (init with expert 0, static unroll) -----
    combined = ex[:, 0:C] * scale[:, 0:1]                       # (B, C)
    for e in range(1, n):                                       # n static & small
        combined = combined + ex[:, e * C:(e + 1) * C] * scale[:, e:e + 1]

    # ---- single lane-dense store: [preds | weights | combined | zero pad] ---
    pad = LANE - (nc + n + C)
    slab = jnp.concatenate(
        [preds, weights, combined, jnp.zeros((B, pad), jnp.float32)],
        axis=-1)                                                # (B, 128)
    out_ref[...] = slab


def wrapper_model_forward(x, expert_w, expert_b, gate_w, gate_b):
    B, D = x.shape
    n, _, C = expert_w.shape
    nc = n * C
    assert nc + n + C <= LANE, "packed output layout requires n*C + n + C <= 128"

    # Fuse expert + gating parameters outside the kernel (cheap XLA reshapes).
    w_experts = jnp.transpose(expert_w, (1, 0, 2)).reshape(D, nc)     # (D, n*C)
    w_fused = jnp.concatenate([w_experts, gate_w], axis=1)            # (D, n*C + n)
    b_fused = jnp.concatenate(
        [expert_b.reshape(1, nc), gate_b.reshape(1, n)], axis=1)      # (1, n*C + n)

    vmem = pl.BlockSpec(memory_space=pltpu.MemorySpace.VMEM)
    slab = pl.pallas_call(
        functools.partial(moe_wrapper_kernel, n=n, C=C),
        out_shape=jax.ShapeDtypeStruct((B, LANE), jnp.float32),
        in_specs=[vmem, vmem, vmem],
        out_specs=vmem,
    )(x, w_fused, b_fused)
    # At real model sizes: add a grid over B (dimension_semantics=("parallel",)),
    # pad K/N of the fused matmul to 128 (v5e) / 256 (v6e, v7x) multiples, and
    # size the B-tile for v7x's 64 MiB VMEM.

    # Unpack the slab (padded lanes 84..127 are never read).
    preds_flat = slab[:, :nc]                                   # (B, n*C)
    weights = slab[:, nc:nc + n]                                # (B, n)
    combined = slab[:, nc + n:nc + n + C]                       # (B, C)

    # Restore the (n, B, C) stacked-preds layout of the PyTorch module. Layout
    # plumbing only; defer if downstream consumers accept (B, n, C).
    preds = preds_flat.reshape(B, n, C).transpose(1, 0, 2)
    return weights, combined, preds


def reference_forward(x, expert_w, expert_b, gate_w, gate_b):
    preds = jnp.einsum("bd,ndc->nbc", x, expert_w) + expert_b[:, None, :]
    weights = jax.nn.softmax(x @ gate_w + gate_b, axis=-1)
    sm = jax.nn.softmax(preds, axis=-1)
    combined = jnp.sum(sm * jnp.transpose(weights)[:, :, None], axis=0)
    return weights, combined, preds


if __name__ == "__main__":
    # Small synthetic shapes: batch=8, features=32, classes=16, experts=4.
    B, D, C, N_EXPERTS = 8, 32, 16, 4

    key = jax.random.PRNGKey(0)
    kx, kew, keb, kgw, kgb = jax.random.split(key, 5)

    x = jax.random.normal(kx, (B, D), dtype=jnp.float32)
    expert_w = jax.random.normal(kew, (N_EXPERTS, D, C), dtype=jnp.float32) * 0.1
    expert_b = jax.random.normal(keb, (N_EXPERTS, C), dtype=jnp.float32) * 0.1
    gate_w = jax.random.normal(kgw, (D, N_EXPERTS), dtype=jnp.float32) * 0.1
    gate_b = jax.random.normal(kgb, (1, N_EXPERTS), dtype=jnp.float32) * 0.1

    weights, combined, preds = jax.block_until_ready(
        wrapper_model_forward(x, expert_w, expert_b, gate_w, gate_b)
    )

    # Correctness check against a pure-JAX reference of the PyTorch forward.
    w_ref, c_ref, p_ref = reference_forward(x, expert_w, expert_b, gate_w, gate_b)
    assert jnp.allclose(weights, w_ref, atol=1e-5, rtol=1e-5)
    assert jnp.allclose(combined, c_ref, atol=1e-5, rtol=1e-5)
    assert jnp.allclose(preds, p_ref, atol=1e-5, rtol=1e-5)

    print("KERNEL_OK")
</pallas_src>

<mosaic_0001>
module attributes {stable_mosaic.version = 11 : i64} {
  func.func @moe_wrapper_kernel(%arg0: memref<8x32xf32, #tpu.memory_space<vmem>>, %arg1: memref<32x68xf32, #tpu.memory_space<vmem>>, %arg2: memref<1x68xf32, #tpu.memory_space<vmem>>, %arg3: memref<8x128xf32, #tpu.memory_space<vmem>>) attributes {dimension_semantics = [], scalar_prefetch = 0 : i64, scratch_operands = 0 : i64, tpu.core_type = #tpu.core_type<tc>} {
    %c0 = arith.constant 0 : index
    %c0_0 = arith.constant 0 : index
    %0 = vector.load %arg0[%c0, %c0_0] : memref<8x32xf32, #tpu.memory_space<vmem>>, vector<8x32xf32>
    %c0_1 = arith.constant 0 : index
    %c0_2 = arith.constant 0 : index
    %1 = vector.load %arg1[%c0_1, %c0_2] : memref<32x68xf32, #tpu.memory_space<vmem>>, vector<32x68xf32>
    %cst = arith.constant dense<0.000000e+00> : vector<8x68xf32>
    %2 = tpu.matmul %0, %1, %cst {dimension_numbers = #tpu.dot_dimension_numbers<[1], [0], [0], [1], [0, 0, 1, 1], [], []>} : vector<8x32xf32>, vector<32x68xf32>, vector<8x68xf32> -> vector<8x68xf32>
    %c0_3 = arith.constant 0 : index
    %c0_4 = arith.constant 0 : index
    %3 = vector.load %arg2[%c0_3, %c0_4] : memref<1x68xf32, #tpu.memory_space<vmem>>, vector<1x68xf32>
    %4 = vector.broadcast %3 : vector<1x68xf32> to vector<8x68xf32>
    %5 = arith.addf %2, %4 : vector<8x68xf32>
    %6 = vector.extract_strided_slice %5 {offsets = [0, 0], sizes = [8, 64], strides = [1, 1]} : vector<8x68xf32> to vector<8x64xf32>
    %7 = vector.extract_strided_slice %5 {offsets = [0, 64], sizes = [8, 4], strides = [1, 1]} : vector<8x68xf32> to vector<8x4xf32>
    %cst_5 = arith.constant dense<0xFF800000> : vector<8xf32>
    %8 = vector.multi_reduction <maximumf>, %7, %cst_5 [1] : vector<8x4xf32> to vector<8xf32>
    %9 = vector.shape_cast %8 : vector<8xf32> to vector<8x1xf32>
    %10 = vector.broadcast %9 : vector<8x1xf32> to vector<8x4xf32>
    %11 = arith.subf %7, %10 : vector<8x4xf32>
    %12 = math.exp %11 : vector<8x4xf32>
    %cst_6 = arith.constant dense<0.000000e+00> : vector<8xf32>
    %13 = vector.multi_reduction <add>, %12, %cst_6 [1] : vector<8x4xf32> to vector<8xf32>
    %14 = vector.shape_cast %13 : vector<8xf32> to vector<8x1xf32>
    %15 = vector.broadcast %14 : vector<8x1xf32> to vector<8x4xf32>
    %16 = arith.divf %12, %15 : vector<8x4xf32>
    %cst_7 = arith.constant dense<0xFF800000> : vector<8xf32>
    %17 = vector.multi_reduction <maximumf>, %6, %cst_7 [1] : vector<8x64xf32> to vector<8xf32>
    %18 = vector.shape_cast %17 : vector<8xf32> to vector<8x1xf32>
    %19 = vector.broadcast %18 : vector<8x1xf32> to vector<8x64xf32>
    %20 = arith.subf %6, %19 : vector<8x64xf32>
    %21 = math.exp %20 : vector<8x64xf32>
    %22 = vector.extract_strided_slice %21 {offsets = [0, 0], sizes = [8, 16], strides = [1, 1]} : vector<8x64xf32> to vector<8x16xf32>
    %cst_8 = arith.constant dense<0.000000e+00> : vector<8xf32>
    %23 = vector.multi_reduction <add>, %22, %cst_8 [1] : vector<8x16xf32> to vector<8xf32>
    %24 = vector.shape_cast %23 : vector<8xf32> to vector<8x1xf32>
    %25 = vector.extract_strided_slice %21 {offsets = [0, 16], sizes = [8, 16], strides = [1, 1]} : vector<8x64xf32> to vector<8x16xf32>
    %cst_9 = arith.constant dense<0.000000e+00> : vector<8xf32>
    %26 = vector.multi_reduction <add>, %25, %cst_9 [1] : vector<8x16xf32> to vector<8xf32>
    %27 = vector.shape_cast %26 : vector<8xf32> to vector<8x1xf32>
    %28 = vector.extract_strided_slice %21 {offsets = [0, 32], sizes = [8, 16], strides = [1, 1]} : vector<8x64xf32> to vector<8x16xf32>
    %cst_10 = arith.constant dense<0.000000e+00> : vector<8xf32>
    %29 = vector.multi_reduction <add>, %28, %cst_10 [1] : vector<8x16xf32> to vector<8xf32>
    %30 = vector.shape_cast %29 : vector<8xf32> to vector<8x1xf32>
    %31 = vector.extract_strided_slice %21 {offsets = [0, 48], sizes = [8, 16], strides = [1, 1]} : vector<8x64xf32> to vector<8x16xf32>
    %cst_11 = arith.constant dense<0.000000e+00> : vector<8xf32>
    %32 = vector.multi_reduction <add>, %31, %cst_11 [1] : vector<8x16xf32> to vector<8xf32>
    %33 = vector.shape_cast %32 : vector<8xf32> to vector<8x1xf32>
    %34 = tpu.concatenate %24, %27, %30, %33 in 1 : vector<8x1xf32>, vector<8x1xf32>, vector<8x1xf32>, vector<8x1xf32> -> vector<8x4xf32>
    %35 = arith.divf %16, %34 : vector<8x4xf32>
    %36 = vector.extract_strided_slice %21 {offsets = [0, 0], sizes = [8, 16], strides = [1, 1]} : vector<8x64xf32> to vector<8x16xf32>
    %37 = vector.extract_strided_slice %35 {offsets = [0, 0], sizes = [8, 1], strides = [1, 1]} : vector<8x4xf32> to vector<8x1xf32>
    %38 = vector.broadcast %37 : vector<8x1xf32> to vector<8x16xf32>
    %39 = arith.mulf %36, %38 : vector<8x16xf32>
    %40 = vector.extract_strided_slice %21 {offsets = [0, 16], sizes = [8, 16], strides = [1, 1]} : vector<8x64xf32> to vector<8x16xf32>
    %41 = vector.extract_strided_slice %35 {offsets = [0, 1], sizes = [8, 1], strides = [1, 1]} : vector<8x4xf32> to vector<8x1xf32>
    %42 = vector.broadcast %41 : vector<8x1xf32> to vector<8x16xf32>
    %43 = arith.mulf %40, %42 : vector<8x16xf32>
    %44 = arith.addf %39, %43 : vector<8x16xf32>
    %45 = vector.extract_strided_slice %21 {offsets = [0, 32], sizes = [8, 16], strides = [1, 1]} : vector<8x64xf32> to vector<8x16xf32>
    %46 = vector.extract_strided_slice %35 {offsets = [0, 2], sizes = [8, 1], strides = [1, 1]} : vector<8x4xf32> to vector<8x1xf32>
    %47 = vector.broadcast %46 : vector<8x1xf32> to vector<8x16xf32>
    %48 = arith.mulf %45, %47 : vector<8x16xf32>
    %49 = arith.addf %44, %48 : vector<8x16xf32>
    %50 = vector.extract_strided_slice %21 {offsets = [0, 48], sizes = [8, 16], strides = [1, 1]} : vector<8x64xf32> to vector<8x16xf32>
    %51 = vector.extract_strided_slice %35 {offsets = [0, 3], sizes = [8, 1], strides = [1, 1]} : vector<8x4xf32> to vector<8x1xf32>
    %52 = vector.broadcast %51 : vector<8x1xf32> to vector<8x16xf32>
    %53 = arith.mulf %50, %52 : vector<8x16xf32>
    %54 = arith.addf %49, %53 : vector<8x16xf32>
    %cst_12 = arith.constant 0.000000e+00 : f32
    %55 = vector.broadcast %cst_12 : f32 to vector<8x44xf32>
    %56 = tpu.concatenate %6, %16, %54, %55 in 1 : vector<8x64xf32>, vector<8x4xf32>, vector<8x16xf32>, vector<8x44xf32> -> vector<8x128xf32>
    %c0_13 = arith.constant 0 : index
    %c0_14 = arith.constant 0 : index
    %57 = vector.load %arg3[%c0_13, %c0_14] : memref<8x128xf32, #tpu.memory_space<vmem>>, vector<8x128xf32>
    tpu.vector_store %arg3[%c0_13, %c0_14], %56 {strides = array<i32>} : memref<8x128xf32, #tpu.memory_space<vmem>>, vector<8x128xf32>,
    return
  }
}

</mosaic_0001>

<llo_original>
// kernel: tpu_custom_call.1
$region0: #{tpu_custom_call.1}
  #allocation0 [shape = 'u32[]', space=smem, size = 0x4, offset = 0x4, fixed_abs, tag = 'smem constant byte address 0x4 - core index']
  #allocation1 [shape = 'u32[144,128]{1,0:T(1,128)}', space=vmem, size = 0x12000, scoped, tag = 'internal scratch']
  %s0 = inlined_call_operand.hbm [shape: f32[8,32], index: 0, kind: input, shape index: {}]
  %s1 = inlined_call_operand.hbm [shape: f32[32,68], index: 1, kind: input, shape index: {}]
  %s2 = inlined_call_operand.vmem [shape: f32[1,68], index: 2, kind: input, shape index: {}]
  %s3 = inlined_call_operand.hbm [shape: f32[8,128], index: 3, kind: output, shape index: {}]
  %s4 = sld [smem:[#allocation0]]
  $region30: #{tpu_custom_call.1} parent=0
    _
  %s6 = ssub.s32 1, %s4
  %s7 = scalar_select 0, %s6, %s4
  $region1: #{tpu_custom_call.1} parent=0
    #allocation2 [shape = 'u8[4096]{0}', space=vmem, size = 0x1000, scoped, tag = 'input window, operand 0, single buffered']
    #allocation3 [shape = 's32[1]{0}', space=sflag, size = 0x4, scoped, tag = 'scoped memory for tpu_custom_call.1']
    #allocation4 [shape = 's32[1]{0}', space=sflag, size = 0x4, scoped, tag = 'scoped memory for tpu_custom_call.1']
    #allocation5 [shape = 'u8[16384]{0}', space=vmem, size = 0x4000, scoped, tag = 'input window, operand 1, single buffered']
    #allocation6 [shape = 's32[1]{0}', space=sflag, size = 0x4, scoped, tag = 'scoped memory for tpu_custom_call.1']
    #allocation7 [shape = 'u8[4096]{0}', space=vmem, size = 0x1000, scoped, tag = 'output window, operand 0, single buffered']
    %8 = vsyncpa [#allocation3], 0
    %9 = vsyncpa [#allocation6], 0
    %10 = vsyncpa [#allocation4], 0
    // Predicated region
    $region2: #{tpu_custom_call.1} parent=1 // pred_check
      _
    $region3: #{tpu_custom_call.1} parent=1 // pred_check_branch
      %12 = sbr.rel (0) target = $region5
    $region4: #{tpu_custom_call.1} parent=1 // pred_region
      %s14 = ssub.s32 128, 128
      %15 = vsyncadd [#allocation3], %s14
      %s17 = sshll.u32 [#allocation2], 4
      %s18 = int_to_ptr.vmem [resolvable:$true] %s17
      %20 = dma.hbm_to_vmem [thread:$0]  %s0, 128, %s18, [#allocation3]
    $region5: #{tpu_custom_call.1} parent=1 // pred_fallthru
      _
    // Predicated region
    $region6: #{tpu_custom_call.1} parent=1 // pred_check
      _
    $region7: #{tpu_custom_call.1} parent=1 // pred_check_branch
      %22 = sbr.rel (0) target = $region9
    $region8: #{tpu_custom_call.1} parent=1 // pred_region
      %s24 = ssub.s32 512, 512
      %25 = vsyncadd [#allocation6], %s24
      %s26 = sshll.u32 [#allocation5], 4
      %s27 = int_to_ptr.vmem [resolvable:$true] %s26
      %32 = dma.hbm_to_vmem [thread:$0]  %s1, 512, %s27, [#allocation6], 128, 128, 8
    $region9: #{tpu_custom_call.1} parent=1 // pred_fallthru
      _
    // Predicated region
    $region10: #{tpu_custom_call.1} parent=1 // pred_check
      _
    $region11: #{tpu_custom_call.1} parent=1 // pred_check_branch
      %34 = sbr.rel (0) target = $region13
    $region12: #{tpu_custom_call.1} parent=1 // pred_region
      _
    $region13: #{tpu_custom_call.1} parent=1 // pred_fallthru
      _
    // Predicated region
    $region14: #{tpu_custom_call.1} parent=1 // pred_check
      _
    $region15: #{tpu_custom_call.1} parent=1 // pred_check_branch
      %36 = sbr.rel (0) target = $region17
    $region16: #{tpu_custom_call.1} parent=1 // pred_region
      %37 = dma.done [#allocation3], 128
    $region17: #{tpu_custom_call.1} parent=1 // pred_fallthru
      _
    // Predicated region
    $region18: #{tpu_custom_call.1} parent=1 // pred_check
      _
    $region19: #{tpu_custom_call.1} parent=1 // pred_check_branch
      %39 = sbr.rel (0) target = $region21
    $region20: #{tpu_custom_call.1} parent=1 // pred_region
      %40 = dma.done [#allocation6], 512
    $region21: #{tpu_custom_call.1} parent=1 // pred_fallthru
      _
    %v41 = vld [vmem:[#allocation2] sm:$0xff]
    %v42 = vld [vmem:[#allocation5] sm:$0xff]
    %v43 = vld [vmem:[#allocation5 + $0x8] sm:$0xff]
    %v44 = vld [vmem:[#allocation5 + $0x10] sm:$0xff]
    %v45 = vld [vmem:[#allocation5 + $0x18] sm:$0xff]
    %v46 = vld [vmem:[%s2] sm:$0x1]
    %v48 = vlaneseq
    %v49 = vshrl.u32 %v48, 7
    %v50 = vsub.s32 0, %v49
    %v51 = vrot.slane %v46, %v50
    %vm53 = vcmask 261120
    %v55 = vsel %vm53, %v41, 0
    %57 = vmatprep.subr.mxu0 0.0
    %58 = vmatpush1.msra.mxu0 %v42
    %59 = vmatprep.subr.mxu0 0.0
    %60 = vmatpush1.msra.mxu0 %v43
    %61 = vmatprep.subr.mxu0 0.0
    %62 = vmatpush1.msra.mxu0 %v44
    %63 = vmatprep.subr.mxu0 0.0
    %64 = vmatpush1.msra.mxu0 %v45
    %65 = vmatprep.subr.mxu0 0.0
    %66 = vmatpush1.msra.mxu0 0.0
    %67 = vmatprep.subr.mxu0 0.0
    %68 = vmatpush1.msra.mxu0 0.0
    %69 = vmatprep.subr.mxu0 0.0
    %70 = vmatpush1.msra.mxu0 0.0
    %71 = vmatprep.subr.mxu0 0.0
    %72 = vmatpush1.msra.mxu0 0.0
    %73 = vmatprep.subr.mxu0 0.0
    %74 = vmatpush1.msra.mxu0 0.0
    %75 = vmatprep.subr.mxu0 0.0
    %76 = vmatpush1.msra.mxu0 0.0
    %77 = vmatprep.subr.mxu0 0.0
    %78 = vmatpush1.msra.mxu0 0.0
    %79 = vmatprep.subr.mxu0 0.0
    %80 = vmatpush1.msra.mxu0 0.0
    %81 = vmatprep.subr.mxu0 0.0
    %82 = vmatpush1.msra.mxu0 0.0
    %83 = vmatprep.subr.mxu0 0.0
    %84 = vmatpush1.msra.mxu0 0.0
    %85 = vmatprep.subr.mxu0 0.0
    %86 = vmatpush1.msra.mxu0 0.0
    %87 = vmatprep.subr.mxu0 0.0
    %88 = vmatpush1.msra.mxu0 0.0
    %89 = vmatprep.subr.mxu0 0.0
    %90 = vmatpush1.msra.mxu0 0.0
    %91 = vmatprep.subr.mxu0 0.0
    %92 = vmatpush1.msra.mxu0 0.0
    %93 = vmatprep.subr.mxu0 0.0
    %94 = vmatpush1.msra.mxu0 0.0
    %95 = vmatprep.subr.mxu0 0.0
    %96 = vmatpush1.msra.mxu0 0.0
    %97 = vmatprep.subr.mxu0 0.0
    %98 = vmatpush1.msra.mxu0 0.0
    %99 = vmatprep.subr.mxu0 0.0
    %100 = vmatpush1.msra.mxu0 0.0
    %101 = vmatprep.subr.mxu0 0.0
    %102 = vmatpush1.msra.mxu0 0.0
    %103 = vmatprep.subr.mxu0 0.0
    %104 = vmatpush1.msra.mxu0 0.0
    %105 = vmatprep.subr.mxu0 0.0
    %106 = vmatpush1.msra.mxu0 0.0
    %107 = vmatprep.subr.mxu0 0.0
    %108 = vmatpush1.msra.mxu0 0.0
    %109 = vmatprep.subr.mxu0 0.0
    %110 = vmatpush1.msra.mxu0 0.0
    %111 = vmatprep.subr.mxu0 0.0
    %112 = vmatpush1.msra.mxu0 0.0
    %113 = vmatprep.subr.mxu0 0.0
    %114 = vmatpush1.msra.mxu0 0.0
    %115 = vmatprep.subr.mxu0 0.0
    %116 = vmatpush1.msra.mxu0 0.0
    %117 = vmatprep.subr.mxu0 0.0
    %118 = vmatpush1.msra.mxu0 0.0
    %119 = vmatprep.subr.mxu0 0.0
    %120 = vmatpush1.msra.mxu0 0.0
    %121 = vmatprep.mubr.f32.mxu0 0.0
    %122 = vmatmul.mubr.f32.gmra.mrb[0].mxu0 %v55
    %v123 = vpop.f32.mrb[0].mxu0
    %v124 = vadd.f32 %v51, %v123
    %v125 = vpop.f32.mrb[0].mxu0
    %126 = vdwg.mxu0
    %vm127 = vcmask 556544
    %v128 = vsel %vm127, %v124, -inf
    %129 = vmax.xlane.f32.xlu0 %v128
    %v130 = vpop.xlane.xlu0 %129
    %v131 = vsub.f32 %v124, %v130
    %v132 = vmul.f32 %v131, 1.442695
    %v133 = vpow.pop %v132
    %135 = vrot.lane.b32.xlu0 %v133, 64
    %v136 = vpop.permute.xlu0 %135
    %vm138 = vcmask 31744
    %v139 = vsel %vm138, %v136, 0.0
    %140 = vadd.xlane.f32.xlu0 %v139
    %v141 = vpop.xlane.xlu0 %140
    %v142 = vrcp.pop %v141
    %v143 = vmul.f32 %v133, %v142
    %vm144 = vcmask 523264
    %v145 = vsel %vm144, %v124, -inf
    %146 = vmax.xlane.f32.xlu0 %v145
    %v147 = vpop.xlane.xlu0 %146
    %v148 = vsub.f32 %v124, %v147
    %v149 = vmul.f32 %v148, 1.442695
    %v150 = vpow.pop %v149
    %vm151 = vcmask 130048
    %v152 = vsel %vm151, %v150, 0.0
    %153 = vadd.xlane.f32.xlu0 %v152
    %v154 = vpop.xlane.xlu0 %153
    %156 = vrot.lane.b32.xlu0 %v150, 112
    %v157 = vpop.permute.xlu0 %156
    %v159 = vsel %vm151, %v157, 0.0
    %160 = vadd.xlane.f32.xlu0 %v159
    %v161 = vpop.xlane.xlu0 %160
    %162 = vrot.lane.b32.xlu0 %v150, 96
    %v163 = vpop.permute.xlu0 %162
    %v165 = vsel %vm151, %v163, 0.0
    %166 = vadd.xlane.f32.xlu0 %v165
    %v167 = vpop.xlane.xlu0 %166
    %168 = vrot.lane.b32.xlu0 %v150, 80
    %v169 = vpop.permute.xlu0 %168
    %v171 = vsel %vm151, %v169, 0.0
    %172 = vadd.xlane.f32.xlu0 %v171
    %v173 = vpop.xlane.xlu0 %172
    %vm174 = vcmask 7168
    %v175 = vsel %vm174, %v154, %v161
    %vm176 = vcmask 15360
    %v177 = vsel %vm176, %v175, %v167
    %vm178 = vcmask 23552
    %v179 = vsel %vm178, %v177, %v173
    %181 = vrot.lane.b32.xlu0 %v179, 64
    %v182 = vpop.permute.xlu0 %181
    %v184 = vrcp.pop %v182
    %v185 = vmul.f32 %v143, %v184
    %187 = vset.pattern.permute.xlu0 64
    %188 = vperm.xlu0 %187, %v185
    %v189 = vpop.permute.xlu0 %188
    %v191 = vmul.f32 %v150, %v189
    %192 = vset.pattern.permute.xlu0 65
    %193 = vperm.xlu0 %192, %v185
    %v194 = vpop.permute.xlu0 %193
    %v196 = vmul.f32 %v150, %v194
    %198 = vrot.lane.b32.xlu0 %v196, 112
    %v199 = vpop.permute.xlu0 %198
    %v201 = vadd.f32 %v191, %v199
    %202 = vset.pattern.permute.xlu0 66
    %203 = vperm.xlu0 %202, %v185
    %v204 = vpop.permute.xlu0 %203
    %v206 = vmul.f32 %v150, %v204
    %208 = vrot.lane.b32.xlu0 %v206, 96
    %v209 = vpop.permute.xlu0 %208
    %v211 = vadd.f32 %v201, %v209
    %212 = vset.pattern.permute.xlu0 67
    %213 = vperm.xlu0 %212, %v185
    %v214 = vpop.permute.xlu0 %213
    %v216 = vmul.f32 %v150, %v214
    %218 = vrot.lane.b32.xlu0 %v216, 80
    %v219 = vpop.permute.xlu0 %218
    %v221 = vadd.f32 %v211, %v219
    %223 = vrot.lane.b32.xlu0 %v221, 68
    %v224 = vpop.permute.xlu0 %223
    %v226 = vsel %vm144, %v124, %v143
    %vm227 = vcmask 556032
    %v228 = vsel %vm227, %v226, %v224
    %vm229 = vcmask 687104
    %v230 = vsel %vm229, %v228, 0.0
    %231 = vst [vmem:[#allocation7] sm:$0xff] %v230
    // Predicated region
    $region22: #{tpu_custom_call.1} parent=1 // pred_check
      _
    $region23: #{tpu_custom_call.1} parent=1 // pred_check_branch
      %233 = sbr.rel (0) target = $region25
    $region24: #{tpu_custom_call.1} parent=1 // pred_region
      %s235 = ssub.s32 128, 128
      %236 = vsyncadd [#allocation4], %s235
      %s238 = sshll.u32 [#allocation7], 4
      %s239 = int_to_ptr.vmem [resolvable:$true] %s238
      %241 = dma.vmem_to_hbm [thread:$0]  %s239, 128, %s3, [#allocation4]
    $region25: #{tpu_custom_call.1} parent=1 // pred_fallthru
      _
    // Predicated region
    $region26: #{tpu_custom_call.1} parent=1 // pred_check
      _
    $region27: #{tpu_custom_call.1} parent=1 // pred_check_branch
      %243 = sbr.rel (0) target = $region29
    $region28: #{tpu_custom_call.1} parent=1 // pred_region
      %244 = dma.done [#allocation4], 128
    $region29: #{tpu_custom_call.1} parent=1 // pred_fallthru
      _
    %245 = vsyncpa [#allocation3], 1
    %246 = vsyncpa [#allocation6], 1
    %247 = vsyncpa [#allocation4], 1

</llo_original>
